<compile_context>
chip_gen: v7x
topology: tpu7x:2x2x1
jax: 0.10.0
libtpu: 0.0.40
codegen_flags: <defaults>
</compile_context>

<pallas_src>
import jax
import jax.numpy as jnp
from jax.experimental import pallas as pl
from jax.experimental.pallas import tpu as pltpu


def _round_up(x, m):
    return ((x + m - 1) // m) * m


def _vmem_physical_bytes():
    """Physical VMEM per TensorCore; conservative fallback if the query fails."""
    try:
        cap = int(pltpu.get_tpu_info().vmem_capacity_bytes)
        if cap > 0:
            return cap
    except Exception:
        pass
    return 64 << 20  # v7x (smallest of v5e/v6e/v7x) -> safe on every generation


def _linear_kernel(x_ref, w_ref, b_ref, o_ref):
    # x_ref: (TM, K), w_ref: (K, TN) (weight pre-transposed), b_ref: (1, TN).
    acc = jnp.dot(x_ref[...], w_ref[...], preferred_element_type=jnp.float32)
    o_ref[...] = (acc + b_ref[...].astype(jnp.float32)).astype(o_ref.dtype)


def _linear_kernel_ksplit(x_ref, w_ref, b_ref, o_ref, acc_ref):
    # Same as above but with a K (D_in) reduction grid axis and f32 accumulator.
    k = pl.program_id(2)

    @pl.when(k == 0)
    def _():
        acc_ref[...] = jnp.zeros_like(acc_ref)

    acc_ref[...] += jnp.dot(x_ref[...], w_ref[...],
                            preferred_element_type=jnp.float32)

    @pl.when(k == pl.num_programs(2) - 1)
    def _():
        o_ref[...] = (acc_ref[...] + b_ref[...].astype(jnp.float32)).astype(o_ref.dtype)


def logistic_regression_forward(x, weight, bias, *, tm_max=512, tn_max=512):
    """x: (B, D_in), weight: (D_out, D_in), bias: (D_out,) -> (B, D_out)."""
    B, D_in = x.shape
    D_out = weight.shape[0]
    dtype = x.dtype
    itemsize = jnp.dtype(dtype).itemsize

    # ---- N (output-feature) tiling: lane-dense, padded to a multiple of 128 ----
    n_min = _round_up(D_out, 128)
    grid_j = pl.cdiv(n_min, tn_max)
    tn = _round_up(pl.cdiv(n_min, grid_j), 128)      # balanced -> small N padding
    n_pad = grid_j * tn

    # ---- M (batch) tiling: avoid padding x whenever possible ----
    if B <= tm_max:
        tm, b_pad, grid_i = B, B, 1                  # full-dim block -> no pad at all
    else:
        b8 = _round_up(B, 8)
        grid_i = pl.cdiv(b8, tm_max)
        tm = _round_up(pl.cdiv(b8, grid_i), 8)       # padding bounded by 8*grid_i rows
        b_pad = grid_i * tm

    # ---- v7x megacore: make sure there are >= 2 parallel grid cells when cheap ----
    if grid_i * grid_j < 2:
        if b_pad >= 16 and b_pad % 16 == 0:
            grid_i, tm = 2, b_pad // 2
        elif n_pad >= 256:
            grid_j, tn = 2, n_pad // 2

    # ---- VMEM budget (derived, not hard-coded) and K-tiling decision ----
    cap = max(16 << 20, _vmem_physical_bytes() - (12 << 20))
    headroom = 4 << 20
    # double-buffered output tile + f32 matmul result / cast temps + bias + slack
    fixed = 2 * tm * tn * itemsize + 2 * tm * tn * 4 + 2 * tn * itemsize + headroom

    def _need(tk_, with_acc):
        return fixed + 2 * (tm + tn) * tk_ * itemsize + (tm * tn * 4 if with_acc else 0)

    if _need(D_in, False) <= cap:
        k_split, tk, k_pad, grid_k = False, D_in, D_in, 1
    else:
        avail = cap - fixed - tm * tn * 4
        tk = max(128, (avail // (2 * (tm + tn) * itemsize)) // 128 * 128)
        grid_k = pl.cdiv(D_in, tk)
        tk = _round_up(pl.cdiv(D_in, grid_k), 128)
        k_pad = grid_k * tk
        k_split = True

    # ---- operand prep ----
    x_p = x
    if b_pad != B or k_pad != D_in:
        # TODO(synk): handle the ragged last batch tile with masked stores instead of
        # materializing a padded copy of x for misaligned very large batches.
        x_p = jnp.pad(x, ((0, b_pad - B), (0, k_pad - D_in)))
    w_t = weight.T                                    # one cheap O(D_out*D_in) pass
    if k_pad != D_in or n_pad != D_out:
        w_t = jnp.pad(w_t, ((0, k_pad - D_in), (0, n_pad - D_out)))
    b2 = bias if n_pad == D_out else jnp.pad(bias, (0, n_pad - D_out))
    b2 = b2.reshape(1, n_pad)

    vmem_limit = int(min(max(_need(tk, k_split), 32 << 20), cap))

    if not k_split:
        # Stream the larger operand exactly once: its block index must depend only
        # on the OUTER grid axis.  (With a single N tile -- the common logistic
        # regression shape -- the weight/bias are fetched exactly once either way.)
        x_bytes = b_pad * k_pad * itemsize
        w_bytes = n_pad * k_pad * itemsize
        if x_bytes >= w_bytes:
            grid = (grid_i, grid_j)
            x_map = lambda i, j: (i, 0)
            w_map = lambda i, j: (0, j)
            b_map = lambda i, j: (0, j)
            o_map = lambda i, j: (i, j)
        else:
            grid = (grid_j, grid_i)
            x_map = lambda j, i: (i, 0)
            w_map = lambda j, i: (0, j)
            b_map = lambda j, i: (0, j)
            o_map = lambda j, i: (i, j)

        out = pl.pallas_call(
            _linear_kernel,
            out_shape=jax.ShapeDtypeStruct((b_pad, n_pad), dtype),
            grid_spec=pltpu.PrefetchScalarGridSpec(
                num_scalar_prefetch=0,
                grid=grid,
                in_specs=[
                    pl.BlockSpec((tm, k_pad), x_map),     # activations
                    pl.BlockSpec((k_pad, tn), w_map),     # pre-transposed weight
                    pl.BlockSpec((1, tn), b_map),         # bias slice
                ],
                out_specs=pl.BlockSpec((tm, tn), o_map),
            ),
            compiler_params=pltpu.CompilerParams(
                dimension_semantics=("parallel", "parallel"),
                vmem_limit_bytes=vmem_limit,
            ),
        )(x_p, w_t, b2)
    else:
        out = pl.pallas_call(
            _linear_kernel_ksplit,
            out_shape=jax.ShapeDtypeStruct((b_pad, n_pad), dtype),
            grid_spec=pltpu.PrefetchScalarGridSpec(
                num_scalar_prefetch=0,
                grid=(grid_i, grid_j, grid_k),
                in_specs=[
                    pl.BlockSpec((tm, tk), lambda i, j, k: (i, k)),
                    pl.BlockSpec((tk, tn), lambda i, j, k: (k, j)),
                    pl.BlockSpec((1, tn), lambda i, j, k: (0, j)),
                ],
                out_specs=pl.BlockSpec((tm, tn), lambda i, j, k: (i, j)),
                scratch_shapes=[pltpu.VMEM((tm, tn), jnp.float32)],
            ),
            compiler_params=pltpu.CompilerParams(
                dimension_semantics=("parallel", "parallel", "arbitrary"),
                vmem_limit_bytes=vmem_limit,
            ),
        )(x_p, w_t, b2)

    if b_pad != B or n_pad != D_out:
        out = out[:B, :D_out]
    return out


def init_linear_params(key, input_dim, output_dim, dtype=jnp.float32):
    # Mirror nn.Linear default init: U(-1/sqrt(in), 1/sqrt(in)) for W and b.
    kw, kb = jax.random.split(key)
    bound = 1.0 / jnp.sqrt(jnp.float32(input_dim))
    weight = jax.random.uniform(kw, (output_dim, input_dim), dtype,
                                minval=-bound, maxval=bound)
    bias = jax.random.uniform(kb, (output_dim,), dtype,
                              minval=-bound, maxval=bound)
    return weight, bias


if __name__ == "__main__":
    key = jax.random.PRNGKey(0)
    k_x, k_p = jax.random.split(key)

    batch, input_dim, output_dim = 8, 32, 16
    x = jax.random.normal(k_x, (batch, input_dim), jnp.float32)
    weight, bias = init_linear_params(k_p, input_dim, output_dim)

    y = logistic_regression_forward(x, weight, bias)
    jax.block_until_ready(y)

    # Correctness check vs. plain JAX reference (forward is Linear only; no sigmoid).
    y_ref = x @ weight.T + bias
    assert y.shape == (batch, output_dim)
    assert jnp.allclose(y, y_ref, atol=1e-5, rtol=1e-5)

    print("KERNEL_OK")
</pallas_src>

<mosaic_0001>
module attributes {stable_mosaic.version = 11 : i64} {
  func.func @_linear_kernel(%arg0: i32, %arg1: i32, %arg2: memref<8x32xf32, #tpu.memory_space<vmem>>, %arg3: memref<32x128xf32, #tpu.memory_space<vmem>>, %arg4: memref<1x128xf32, #tpu.memory_space<vmem>>, %arg5: memref<8x128xf32, #tpu.memory_space<vmem>>) attributes {dimension_semantics = [#tpu.dimension_semantics<parallel>, #tpu.dimension_semantics<parallel>], iteration_bounds = array<i64: 1, 1>, scalar_prefetch = 0 : i64, scratch_operands = 0 : i64, tpu.core_type = #tpu.core_type<tc>, window_params = [{transform_indices = @transform_0, window_bounds = array<i64: 8, 32>}, {transform_indices = @transform_1, window_bounds = array<i64: 32, 128>}, {transform_indices = @transform_2, window_bounds = array<i64: 1, 128>}, {transform_indices = @transform_3, window_bounds = array<i64: 8, 128>}]} {
    %c0 = arith.constant 0 : index
    %c0_0 = arith.constant 0 : index
    %0 = vector.load %arg2[%c0, %c0_0] : memref<8x32xf32, #tpu.memory_space<vmem>>, vector<8x32xf32>
    %c0_1 = arith.constant 0 : index
    %c0_2 = arith.constant 0 : index
    %1 = vector.load %arg3[%c0_1, %c0_2] : memref<32x128xf32, #tpu.memory_space<vmem>>, vector<32x128xf32>
    %cst = arith.constant dense<0.000000e+00> : vector<8x128xf32>
    %2 = tpu.matmul %0, %1, %cst {dimension_numbers = #tpu.dot_dimension_numbers<[1], [0], [0], [1], [0, 0, 1, 1], [], []>} : vector<8x32xf32>, vector<32x128xf32>, vector<8x128xf32> -> vector<8x128xf32>
    %c0_3 = arith.constant 0 : index
    %c0_4 = arith.constant 0 : index
    %3 = vector.load %arg4[%c0_3, %c0_4] : memref<1x128xf32, #tpu.memory_space<vmem>>, vector<1x128xf32>
    %4 = vector.broadcast %3 : vector<1x128xf32> to vector<8x128xf32>
    %5 = arith.addf %2, %4 : vector<8x128xf32>
    %c0_5 = arith.constant 0 : index
    %c0_6 = arith.constant 0 : index
    %6 = vector.load %arg5[%c0_5, %c0_6] : memref<8x128xf32, #tpu.memory_space<vmem>>, vector<8x128xf32>
    tpu.vector_store %arg5[%c0_5, %c0_6], %5 {strides = array<i32>} : memref<8x128xf32, #tpu.memory_space<vmem>>, vector<8x128xf32>,
    return
  }
  func.func @transform_0(%arg0: i32, %arg1: i32) -> (i32, i32) {
    %c0_i32 = arith.constant 0 : i32
    %c0_i32_0 = arith.constant 0 : i32
    return %arg1, %c0_i32 : i32, i32
  }
  func.func @transform_1(%arg0: i32, %arg1: i32) -> (i32, i32) {
    %c0_i32 = arith.constant 0 : i32
    %c0_i32_0 = arith.constant 0 : i32
    return %c0_i32, %arg0 : i32, i32
  }
  func.func @transform_2(%arg0: i32, %arg1: i32) -> (i32, i32) {
    %c0_i32 = arith.constant 0 : i32
    %c0_i32_0 = arith.constant 0 : i32
    return %c0_i32, %arg0 : i32, i32
  }
  func.func @transform_3(%arg0: i32, %arg1: i32) -> (i32, i32) {
    %c0_i32 = arith.constant 0 : i32
    return %arg1, %arg0 : i32, i32
  }
}

</mosaic_0001>

<llo_original>
// kernel: tpu_custom_call.1
$region0: #{tpu_custom_call.1}
  #allocation0 [shape = 'u32[]', space=smem, size = 0x4, offset = 0x4, fixed_abs, tag = 'smem constant byte address 0x4 - core index']
  #allocation1 [shape = 'u32[144,128]{1,0:T(1,128)}', space=vmem, size = 0x12000, scoped, tag = 'internal scratch']
  %s0 = inlined_call_operand.hbm [shape: f32[8,32], index: 0, kind: input, shape index: {}]
  %s1 = inlined_call_operand.hbm [shape: f32[32,128], index: 1, kind: input, shape index: {}]
  %s2 = inlined_call_operand.vmem [shape: f32[1,128], index: 2, kind: input, shape index: {}]
  %s3 = inlined_call_operand.hbm [shape: f32[8,128], index: 3, kind: output, shape index: {}]
  %s4 = sld [smem:[#allocation0]]
  $region30: #{tpu_custom_call.1} parent=0
    _
  %s6 = ssub.s32 1, %s4
  %s7 = scalar_select 0, %s6, %s4
  $region1: #{tpu_custom_call.1} parent=0
    #allocation2 [shape = 'u8[4096]{0}', space=vmem, size = 0x1000, scoped, tag = 'input window, operand 0, single buffered']
    #allocation3 [shape = 's32[1]{0}', space=sflag, size = 0x4, scoped, tag = 'scoped memory for tpu_custom_call.1']
    #allocation4 [shape = 's32[1]{0}', space=sflag, size = 0x4, scoped, tag = 'scoped memory for tpu_custom_call.1']
    #allocation5 [shape = 'u8[16384]{0}', space=vmem, size = 0x4000, scoped, tag = 'input window, operand 1, single buffered']
    #allocation6 [shape = 's32[1]{0}', space=sflag, size = 0x4, scoped, tag = 'scoped memory for tpu_custom_call.1']
    #allocation7 [shape = 'u8[4096]{0}', space=vmem, size = 0x1000, scoped, tag = 'output window, operand 0, single buffered']
    %8 = vsyncpa [#allocation3], 0
    %9 = vsyncpa [#allocation6], 0
    %10 = vsyncpa [#allocation4], 0
    // Predicated region
    $region2: #{tpu_custom_call.1} parent=1 // pred_check
      _
    $region3: #{tpu_custom_call.1} parent=1 // pred_check_branch
      %12 = sbr.rel (0) target = $region5
    $region4: #{tpu_custom_call.1} parent=1 // pred_region
      %s14 = ssub.s32 128, 128
      %15 = vsyncadd [#allocation3], %s14
      %s17 = sshll.u32 [#allocation2], 4
      %s18 = int_to_ptr.vmem [resolvable:$true] %s17
      %20 = dma.hbm_to_vmem [thread:$0]  %s0, 128, %s18, [#allocation3]
    $region5: #{tpu_custom_call.1} parent=1 // pred_fallthru
      _
    // Predicated region
    $region6: #{tpu_custom_call.1} parent=1 // pred_check
      _
    $region7: #{tpu_custom_call.1} parent=1 // pred_check_branch
      %22 = sbr.rel (0) target = $region9
    $region8: #{tpu_custom_call.1} parent=1 // pred_region
      %s24 = ssub.s32 512, 512
      %25 = vsyncadd [#allocation6], %s24
      %s26 = sshll.u32 [#allocation5], 4
      %s27 = int_to_ptr.vmem [resolvable:$true] %s26
      %32 = dma.hbm_to_vmem [thread:$0]  %s1, 512, %s27, [#allocation6], 128, 128, 8
    $region9: #{tpu_custom_call.1} parent=1 // pred_fallthru
      _
    // Predicated region
    $region10: #{tpu_custom_call.1} parent=1 // pred_check
      _
    $region11: #{tpu_custom_call.1} parent=1 // pred_check_branch
      %34 = sbr.rel (0) target = $region13
    $region12: #{tpu_custom_call.1} parent=1 // pred_region
      _
    $region13: #{tpu_custom_call.1} parent=1 // pred_fallthru
      _
    // Predicated region
    $region14: #{tpu_custom_call.1} parent=1 // pred_check
      _
    $region15: #{tpu_custom_call.1} parent=1 // pred_check_branch
      %36 = sbr.rel (0) target = $region17
    $region16: #{tpu_custom_call.1} parent=1 // pred_region
      %37 = dma.done [#allocation3], 128
    $region17: #{tpu_custom_call.1} parent=1 // pred_fallthru
      _
    // Predicated region
    $region18: #{tpu_custom_call.1} parent=1 // pred_check
      _
    $region19: #{tpu_custom_call.1} parent=1 // pred_check_branch
      %39 = sbr.rel (0) target = $region21
    $region20: #{tpu_custom_call.1} parent=1 // pred_region
      %40 = dma.done [#allocation6], 512
    $region21: #{tpu_custom_call.1} parent=1 // pred_fallthru
      _
    %v41 = vld [vmem:[#allocation2] sm:$0xff]
    %v42 = vld [vmem:[#allocation5] sm:$0xff]
    %v43 = vld [vmem:[#allocation5 + $0x8] sm:$0xff]
    %v44 = vld [vmem:[#allocation5 + $0x10] sm:$0xff]
    %v45 = vld [vmem:[#allocation5 + $0x18] sm:$0xff]
    %v46 = vld [vmem:[%s2] sm:$0x1]
    %v48 = vlaneseq
    %v49 = vshrl.u32 %v48, 7
    %v50 = vsub.s32 0, %v49
    %v51 = vrot.slane %v46, %v50
    %vm53 = vcmask 261120
    %v55 = vsel %vm53, %v41, 0
    %57 = vmatprep.subr.mxu0 0.0
    %58 = vmatpush1.msra.mxu0 %v42
    %59 = vmatprep.subr.mxu0 0.0
    %60 = vmatpush1.msra.mxu0 %v43
    %61 = vmatprep.subr.mxu0 0.0
    %62 = vmatpush1.msra.mxu0 %v44
    %63 = vmatprep.subr.mxu0 0.0
    %64 = vmatpush1.msra.mxu0 %v45
    %65 = vmatprep.subr.mxu0 0.0
    %66 = vmatpush1.msra.mxu0 0.0
    %67 = vmatprep.subr.mxu0 0.0
    %68 = vmatpush1.msra.mxu0 0.0
    %69 = vmatprep.subr.mxu0 0.0
    %70 = vmatpush1.msra.mxu0 0.0
    %71 = vmatprep.subr.mxu0 0.0
    %72 = vmatpush1.msra.mxu0 0.0
    %73 = vmatprep.subr.mxu0 0.0
    %74 = vmatpush1.msra.mxu0 0.0
    %75 = vmatprep.subr.mxu0 0.0
    %76 = vmatpush1.msra.mxu0 0.0
    %77 = vmatprep.subr.mxu0 0.0
    %78 = vmatpush1.msra.mxu0 0.0
    %79 = vmatprep.subr.mxu0 0.0
    %80 = vmatpush1.msra.mxu0 0.0
    %81 = vmatprep.subr.mxu0 0.0
    %82 = vmatpush1.msra.mxu0 0.0
    %83 = vmatprep.subr.mxu0 0.0
    %84 = vmatpush1.msra.mxu0 0.0
    %85 = vmatprep.subr.mxu0 0.0
    %86 = vmatpush1.msra.mxu0 0.0
    %87 = vmatprep.subr.mxu0 0.0
    %88 = vmatpush1.msra.mxu0 0.0
    %89 = vmatprep.subr.mxu0 0.0
    %90 = vmatpush1.msra.mxu0 0.0
    %91 = vmatprep.subr.mxu0 0.0
    %92 = vmatpush1.msra.mxu0 0.0
    %93 = vmatprep.subr.mxu0 0.0
    %94 = vmatpush1.msra.mxu0 0.0
    %95 = vmatprep.subr.mxu0 0.0
    %96 = vmatpush1.msra.mxu0 0.0
    %97 = vmatprep.subr.mxu0 0.0
    %98 = vmatpush1.msra.mxu0 0.0
    %99 = vmatprep.subr.mxu0 0.0
    %100 = vmatpush1.msra.mxu0 0.0
    %101 = vmatprep.subr.mxu0 0.0
    %102 = vmatpush1.msra.mxu0 0.0
    %103 = vmatprep.subr.mxu0 0.0
    %104 = vmatpush1.msra.mxu0 0.0
    %105 = vmatprep.subr.mxu0 0.0
    %106 = vmatpush1.msra.mxu0 0.0
    %107 = vmatprep.subr.mxu0 0.0
    %108 = vmatpush1.msra.mxu0 0.0
    %109 = vmatprep.subr.mxu0 0.0
    %110 = vmatpush1.msra.mxu0 0.0
    %111 = vmatprep.subr.mxu0 0.0
    %112 = vmatpush1.msra.mxu0 0.0
    %113 = vmatprep.subr.mxu0 0.0
    %114 = vmatpush1.msra.mxu0 0.0
    %115 = vmatprep.subr.mxu0 0.0
    %116 = vmatpush1.msra.mxu0 0.0
    %117 = vmatprep.subr.mxu0 0.0
    %118 = vmatpush1.msra.mxu0 0.0
    %119 = vmatprep.subr.mxu0 0.0
    %120 = vmatpush1.msra.mxu0 0.0
    %121 = vmatprep.mubr.f32.mxu0 0.0
    %122 = vmatmul.mubr.f32.gmra.mrb[0].mxu0 %v55
    %v123 = vpop.f32.mrb[0].mxu0
    %v124 = vadd.f32 %v51, %v123
    %v125 = vpop.f32.mrb[0].mxu0
    %126 = vdwg.mxu0
    %127 = vst [vmem:[#allocation7] sm:$0xff] %v124
    // Predicated region
    $region22: #{tpu_custom_call.1} parent=1 // pred_check
      _
    $region23: #{tpu_custom_call.1} parent=1 // pred_check_branch
      %129 = sbr.rel (0) target = $region25
    $region24: #{tpu_custom_call.1} parent=1 // pred_region
      %s131 = ssub.s32 128, 128
      %132 = vsyncadd [#allocation4], %s131
      %s134 = sshll.u32 [#allocation7], 4
      %s135 = int_to_ptr.vmem [resolvable:$true] %s134
      %137 = dma.vmem_to_hbm [thread:$0]  %s135, 128, %s3, [#allocation4]
    $region25: #{tpu_custom_call.1} parent=1 // pred_fallthru
      _
    // Predicated region
    $region26: #{tpu_custom_call.1} parent=1 // pred_check
      _
    $region27: #{tpu_custom_call.1} parent=1 // pred_check_branch
      %139 = sbr.rel (0) target = $region29
    $region28: #{tpu_custom_call.1} parent=1 // pred_region
      %140 = dma.done [#allocation4], 128
    $region29: #{tpu_custom_call.1} parent=1 // pred_fallthru
      _
    %141 = vsyncpa [#allocation3], 1
    %142 = vsyncpa [#allocation6], 1
    %143 = vsyncpa [#allocation4], 1

</llo_original>
